<compile_context>
chip_gen: v5e
topology: v5e:2x2
jax: 0.10.0
libtpu: 0.0.40
codegen_flags: <defaults>
</compile_context>

<pallas_src>
import functools
import math

import jax
import jax.numpy as jnp
from jax import lax
from jax.experimental import pallas as pl
from jax.experimental.pallas import tpu as pltpu


# ---------------------------------------------------------------------------
# Kernel 1: fused QKV projection (single [ts,H]x[H,3H] MXU matmul) + RoPE.
# ---------------------------------------------------------------------------
def qkv_rope_kernel(x_ref, w_ref, ra_ref, rb1_ref, rb2_ref,
                    q_ref, k_ref, v_ref, *, hidden, half):
    x = x_ref[0]                                                        # [ts, H]
    qkv = jnp.dot(x, w_ref[...], preferred_element_type=jnp.float32)   # [ts, 3H] f32
    qk = qkv[:, :2 * hidden]                                            # Q|K sections
    # Per-head rotate-half expressed as two full-width lane rolls (XLU slot);
    # the head-local half-selection and signs live in the ra/rb1/rb2 tables.
    up = pltpu.roll(qk, shift=2 * hidden - half, axis=1)   # lane i <- qk[i + half]
    dn = pltpu.roll(qk, shift=half, axis=1)                # lane i <- qk[i - half]
    qk_rot = qk * ra_ref[...] + up * rb1_ref[...] + dn * rb2_ref[...]
    # Softmax scale was folded into the Q columns of w_qkv in the wrapper.
    q_ref[0] = qk_rot[:, :hidden].astype(q_ref.dtype)
    k_ref[0] = qk_rot[:, hidden:].astype(k_ref.dtype)
    v_ref[0] = qkv[:, 2 * hidden:].astype(v_ref.dtype)


# ---------------------------------------------------------------------------
# Kernel 2: flash attention (online softmax, causal) + fused output projection.
# ---------------------------------------------------------------------------
def flash_attn_kernel(q_ref, k_ref, v_ref, wo_ref, y_ref,
                      m_ref, l_ref, acc_ref,
                      *, num_heads, head_dim, mxu_dtype, approx_recip):
    qi = pl.program_id(1)
    ki = pl.program_id(2)
    nk = pl.num_programs(2)

    @pl.when(ki == 0)
    def _():
        m_ref[...] = jnp.full_like(m_ref, -jnp.inf)
        l_ref[...] = jnp.zeros_like(l_ref)
        acc_ref[...] = jnp.zeros_like(acc_ref)

    def kv_step(masked):
        q = q_ref[0]        # [tq, H]  RoPE'd, pre-scaled (intermediate dtype)
        k = k_ref[0]        # [tk, H]
        v = v_ref[0]        # [tk, H]
        tq, tk = q.shape[0], k.shape[0]
        if masked:
            # Only the diagonal tile (ki == qi, tq == tk) needs the causal mask.
            row = lax.broadcasted_iota(jnp.int32, (tq, tk), 0)
            col = lax.broadcasted_iota(jnp.int32, (tq, tk), 1)
            mask = row >= col
        m_prev = m_ref[...]        # [tq, H] (per-head stats broadcast over lanes)
        l_prev = l_ref[...]
        acc_prev = acc_ref[...]
        m_out, l_out, acc_out = [], [], []
        # TODO(synk): for num_heads >> 8 switch to lax.fori_loop / a head grid axis
        # to bound vreg live ranges instead of a static Python unroll.
        for h in range(num_heads):
            lo = h * head_dim
            qh = q[:, lo:lo + head_dim].astype(mxu_dtype)
            kh = k[:, lo:lo + head_dim].astype(mxu_dtype)
            vh = v[:, lo:lo + head_dim].astype(mxu_dtype)
            # Contract head_dim directly — no materialized transpose of k.
            s = lax.dot_general(qh, kh, (((1,), (1,)), ((), ())),
                                preferred_element_type=jnp.float32)    # [tq, tk]
            if masked:
                s = jnp.where(mask, s, -jnp.inf)
            mh_prev = m_prev[:, lo:lo + 1]                              # [tq, 1]
            mh = jnp.maximum(mh_prev, jnp.max(s, axis=-1, keepdims=True))
            alpha = jnp.exp(mh_prev - mh)
            p = jnp.exp(s - mh)
            lh = alpha * l_prev[:, lo:lo + 1] + jnp.sum(p, axis=-1, keepdims=True)
            pv = jnp.dot(p.astype(mxu_dtype), vh,
                         preferred_element_type=jnp.float32)            # [tq, hd]
            ah = alpha * acc_prev[:, lo:lo + head_dim] + pv
            m_out.append(jnp.broadcast_to(mh, (tq, head_dim)))
            l_out.append(jnp.broadcast_to(lh, (tq, head_dim)))
            acc_out.append(ah)
        # One unmasked, lane-dense [tq, H] store per buffer per kv step.
        m_ref[...] = jnp.concatenate(m_out, axis=-1)
        l_ref[...] = jnp.concatenate(l_out, axis=-1)
        acc_ref[...] = jnp.concatenate(acc_out, axis=-1)

    @pl.when(ki == qi)           # diagonal tile: masked path
    def _():
        kv_step(masked=True)

    @pl.when(ki < qi)            # fully below the diagonal: unmasked path
    def _():
        kv_step(masked=False)
    # ki > qi: compute skipped entirely (and its K/V DMA is elided by the clamped
    # index_map in the wrapper).

    @pl.when(ki == nk - 1)
    def _():
        # Full-width normalize (l is broadcast across each head's lanes) + fused
        # output projection; single lane-dense store of the [tq, H] result.
        o = acc_ref[...] * pl.reciprocal(l_ref[...], approx=approx_recip)
        y_ref[0] = jnp.dot(o.astype(mxu_dtype), wo_ref[...],
                           preferred_element_type=jnp.float32).astype(y_ref.dtype)


# ---------------------------------------------------------------------------
# One-time weight prep (outside the per-call path).
# ---------------------------------------------------------------------------
def prepare_weights(wq, wk, wv, wo, *, num_heads, mxu_dtype=jnp.bfloat16):
    """torch-layout ([out,in]) weights -> transposed, Q|K|V concatenated [H,3H],
    softmax scale folded into the Q columns, cast to the MXU operand dtype."""
    H = wq.shape[0]
    head_dim = H // num_heads
    scale = head_dim ** (-0.5)
    w_qkv = jnp.concatenate([wq.T * scale, wk.T, wv.T], axis=-1).astype(mxu_dtype)
    wo_t = wo.T.astype(mxu_dtype)
    return w_qkv, wo_t


def _rope_tables(seq_len, head_dim, num_heads, scaling_factor):
    """Tables of width 2H (Q and K sections) so RoPE = t*A + roll_up(t)*B1 + roll_dn(t)*B2."""
    half = head_dim // 2
    inv_freq = 1.0 / (10000.0 ** (jnp.arange(0, head_dim, 2, dtype=jnp.float32)
                                  / head_dim))
    t = jnp.arange(seq_len, dtype=jnp.float32) * scaling_factor
    freqs = t[:, None] * inv_freq[None, :]                 # [S, half]
    sin_f, cos_f = jnp.sin(freqs), jnp.cos(freqs)
    zero = jnp.zeros_like(cos_f)
    # Reference concatenates (sin, cos) then calls the first chunk "cos" and the
    # second "sin" — reproduce that swapped convention exactly.
    a = jnp.tile(jnp.concatenate([sin_f, sin_f], axis=-1), (1, 2 * num_heads))
    b1 = jnp.tile(jnp.concatenate([-cos_f, zero], axis=-1), (1, 2 * num_heads))
    b2 = jnp.tile(jnp.concatenate([zero, cos_f], axis=-1), (1, 2 * num_heads))
    return a, b1, b2                                        # each [S, 2H]


def _vmem_limit_bytes(block_specs, scratch_bytes=0):
    """Explicit VMEM budget from actual (double-buffered) tile sizes + headroom
    (kept well under v7x's 64 MiB physical VMEM)."""
    total = scratch_bytes
    for shape, dtype in block_specs:
        total += 2 * math.prod(shape) * jnp.dtype(dtype).itemsize
    return int(min(100 * 1024 * 1024, max(16 * 1024 * 1024, 1.5 * total + (4 << 20))))


# ---------------------------------------------------------------------------
# Wrapper
# ---------------------------------------------------------------------------
def multi_query_self_attention(x, w_qkv, wo_t, *, num_heads, scaling_factor=1.0,
                               kv_cache=None, mxu_dtype=jnp.bfloat16, seq_tile=256):
    """x: [B, S, H] (f32). w_qkv/wo_t from prepare_weights (already MXU dtype)."""
    # TODO(synk): incremental-decode path (kv_cache passed in and appended to) is
    # not kernelized; only the prefill (kv_cache=None) path is implemented here.
    assert kv_cache is None

    B, S, H = x.shape
    head_dim = H // num_heads
    half = head_dim // 2
    assert head_dim % 2 == 0

    # Sequence tile shared by the projection tiles and the flash q/kv tiles
    # (256 default per review; sweep 512 on v6e).  v7x megacore note: B * (S//blk)
    # should be >= 2 (and ideally even) so both TensorCores get work.
    blk = S if S <= seq_tile else seq_tile
    if blk < S:
        assert S % blk == 0, "seq_len must be a multiple of the sequence tile"

    inter_dtype = mxu_dtype        # q/k/v intermediates + kv cache dtype
    approx_recip = jnp.dtype(mxu_dtype) == jnp.dtype(jnp.bfloat16)
    itemsize = jnp.dtype(inter_dtype).itemsize

    rope_a, rope_b1, rope_b2 = _rope_tables(S, head_dim, num_heads, scaling_factor)
    x_in = x.astype(mxu_dtype)

    # -------------------- kernel 1: fused QKV projection + RoPE --------------------
    n_s = S // blk
    k1_vmem = _vmem_limit_bytes([
        ((blk, H), mxu_dtype), ((H, 3 * H), mxu_dtype),
        ((blk, 2 * H), jnp.float32), ((blk, 2 * H), jnp.float32),
        ((blk, 2 * H), jnp.float32),
        ((blk, H), inter_dtype), ((blk, H), inter_dtype), ((blk, H), inter_dtype)])
    proj_kernel = functools.partial(qkv_rope_kernel, hidden=H, half=half)
    qs, kr, vr = pl.pallas_call(
        proj_kernel,
        out_shape=tuple(jax.ShapeDtypeStruct((B, S, H), inter_dtype) for _ in range(3)),
        grid_spec=pltpu.PrefetchScalarGridSpec(
            num_scalar_prefetch=0,
            grid=(B, n_s),
            in_specs=[
                pl.BlockSpec((1, blk, H), lambda b, si: (b, si, 0)),
                pl.BlockSpec((H, 3 * H), lambda b, si: (0, 0)),       # resident weight
                pl.BlockSpec((blk, 2 * H), lambda b, si: (si, 0)),
                pl.BlockSpec((blk, 2 * H), lambda b, si: (si, 0)),
                pl.BlockSpec((blk, 2 * H), lambda b, si: (si, 0)),
            ],
            out_specs=[pl.BlockSpec((1, blk, H), lambda b, si: (b, si, 0))] * 3,
        ),
        compiler_params=pltpu.CompilerParams(
            dimension_semantics=("parallel", "parallel"),
            vmem_limit_bytes=k1_vmem),
        cost_estimate=pl.CostEstimate(
            flops=2 * B * S * H * 3 * H + 10 * B * S * 2 * H,
            transcendentals=0,
            bytes_accessed=(4 * B * S * H + 3 * H * H) * itemsize + 3 * S * 2 * H * 4),
    )(x_in, w_qkv, rope_a, rope_b1, rope_b2)

    # ---------------- kernel 2: flash attention + output projection ----------------
    tq = tk = blk
    nq = nk = S // blk
    k2_vmem = _vmem_limit_bytes(
        [((tq, H), inter_dtype), ((tk, H), inter_dtype), ((tk, H), inter_dtype),
         ((H, H), mxu_dtype), ((tq, H), jnp.float32)],
        scratch_bytes=3 * tq * H * 4)
    attn_kernel = functools.partial(flash_attn_kernel, num_heads=num_heads,
                                    head_dim=head_dim, mxu_dtype=mxu_dtype,
                                    approx_recip=approx_recip)
    y = pl.pallas_call(
        attn_kernel,
        out_shape=jax.ShapeDtypeStruct((B, S, H), jnp.float32),
        grid_spec=pltpu.PrefetchScalarGridSpec(
            num_scalar_prefetch=0,
            grid=(B, nq, nk),
            in_specs=[
                pl.BlockSpec((1, tq, H), lambda b, qi, ki: (b, qi, 0)),
                # Clamp the K/V block index to the causal frontier: kv tiles fully
                # above the diagonal keep the previous block index, so the auto
                # pipeline skips their HBM fetch (compute skipped by pl.when).
                pl.BlockSpec((1, tk, H), lambda b, qi, ki: (b, jnp.minimum(ki, qi), 0)),
                pl.BlockSpec((1, tk, H), lambda b, qi, ki: (b, jnp.minimum(ki, qi), 0)),
                pl.BlockSpec((H, H), lambda b, qi, ki: (0, 0)),        # resident weight
            ],
            out_specs=pl.BlockSpec((1, tq, H), lambda b, qi, ki: (b, qi, 0)),
            scratch_shapes=[
                pltpu.VMEM((tq, H), jnp.float32),   # running max (bcast over head lanes)
                pltpu.VMEM((tq, H), jnp.float32),   # running sum (bcast over head lanes)
                pltpu.VMEM((tq, H), jnp.float32),   # un-normalized weighted-V acc
            ],
        ),
        compiler_params=pltpu.CompilerParams(
            dimension_semantics=("parallel", "parallel", "arbitrary"),
            vmem_limit_bytes=k2_vmem),
        cost_estimate=pl.CostEstimate(
            flops=2 * B * S * S * H + 2 * B * S * H * H,
            transcendentals=B * num_heads * S * S // 2,
            bytes_accessed=3 * B * S * H * itemsize + H * H * itemsize + B * S * H * 4),
    )(qs, kr, vr, wo_t)

    # Lane-dense [B, S, H] caches reshaped to the module's [B, nh, S, hd] layout (glue).
    k_cache = kr.reshape(B, S, num_heads, head_dim).transpose(0, 2, 1, 3)
    v_cache = vr.reshape(B, S, num_heads, head_dim).transpose(0, 2, 1, 3)
    return y, {"K": k_cache, "V": v_cache}


# ---------------------------------------------------------------------------
# Pure-JAX reference (mirrors the PyTorch module exactly, incl. swapped sin/cos).
# ---------------------------------------------------------------------------
def reference_jax(x, wq, wk, wv, wo, *, num_heads, scaling_factor=1.0):
    B, S, H = x.shape
    hd = H // num_heads
    scale = hd ** (-0.5)
    with jax.default_matmul_precision("highest"):
        def proj(w):
            return (x @ w.T).reshape(B, S, num_heads, hd).transpose(0, 2, 1, 3)
        Q, K, V = proj(wq), proj(wk), proj(wv)
        inv_freq = 1.0 / (10000.0 ** (jnp.arange(0, hd, 2, dtype=jnp.float32) / hd))
        t = jnp.arange(S, dtype=jnp.float32) * scaling_factor
        freqs = t[:, None] * inv_freq[None, :]
        emb = jnp.concatenate([jnp.sin(freqs), jnp.cos(freqs)], axis=-1)[None, None]
        c, s = emb[..., :hd // 2], emb[..., hd // 2:]

        def rope(u):
            u1, u2 = u[..., :hd // 2], u[..., hd // 2:]
            return jnp.concatenate([u1 * c - u2 * s, u1 * s + u2 * c], axis=-1)

        Q, K = rope(Q), rope(K)
        scores = jnp.einsum('bhqd,bhkd->bhqk', Q, K) * scale
        mask = jnp.tril(jnp.ones((S, S), dtype=bool))
        scores = jnp.where(mask, scores, -jnp.inf)
        w = jax.nn.softmax(scores, axis=-1)
        out = jnp.einsum('bhqk,bhkd->bhqd', w, V)
        out = out.transpose(0, 2, 1, 3).reshape(B, S, H)
        return out @ wo.T, K, V


if __name__ == "__main__":
    B, S, H, NUM_HEADS = 2, 16, 128, 4   # small, TPU-friendly (H lane-dense)

    key = jax.random.PRNGKey(0)
    kx, kq, kk, kv, ko = jax.random.split(key, 5)
    x = jax.random.normal(kx, (B, S, H), dtype=jnp.float32)
    wq = jax.random.normal(kq, (H, H), dtype=jnp.float32) * 0.05
    wk = jax.random.normal(kk, (H, H), dtype=jnp.float32) * 0.05
    wv = jax.random.normal(kv, (H, H), dtype=jnp.float32) * 0.05
    wo = jax.random.normal(ko, (H, H), dtype=jnp.float32) * 0.05

    y_ref, k_ref, v_ref = reference_jax(x, wq, wk, wv, wo,
                                        num_heads=NUM_HEADS, scaling_factor=1.0)

    # Fast path (default): bf16 MXU operands + f32 accumulation, bf16 kv-cache.
    wqkv_bf, wo_bf = prepare_weights(wq, wk, wv, wo, num_heads=NUM_HEADS,
                                     mxu_dtype=jnp.bfloat16)
    y16, cache16 = multi_query_self_attention(x, wqkv_bf, wo_bf, num_heads=NUM_HEADS,
                                              scaling_factor=1.0,
                                              mxu_dtype=jnp.bfloat16)
    jax.block_until_ready((y16, cache16))
    assert jnp.allclose(y16, y_ref, atol=3e-2, rtol=3e-2), "bf16 output mismatch"
    assert jnp.allclose(cache16["K"].astype(jnp.float32), k_ref,
                        atol=3e-2, rtol=3e-2), "bf16 K cache mismatch"
    assert jnp.allclose(cache16["V"].astype(jnp.float32), v_ref,
                        atol=3e-2, rtol=3e-2), "bf16 V cache mismatch"

    # Exact path: f32 MXU operands — matches the PyTorch module at 1e-4.
    wqkv_f32, wo_f32 = prepare_weights(wq, wk, wv, wo, num_heads=NUM_HEADS,
                                       mxu_dtype=jnp.float32)
    y32, cache32 = multi_query_self_attention(x, wqkv_f32, wo_f32, num_heads=NUM_HEADS,
                                              scaling_factor=1.0,
                                              mxu_dtype=jnp.float32)
    jax.block_until_ready((y32, cache32))
    assert jnp.allclose(y32, y_ref, atol=1e-4, rtol=1e-4), "f32 output mismatch"
    assert jnp.allclose(cache32["K"], k_ref, atol=1e-4, rtol=1e-4), "f32 K cache mismatch"
    assert jnp.allclose(cache32["V"], v_ref, atol=1e-4, rtol=1e-4), "f32 V cache mismatch"

    print("KERNEL_OK")
</pallas_src>

<mosaic_0001>
module attributes {stable_mosaic.version = 11 : i64} {
  func.func @qkv_rope_kernel(%arg0: i32, %arg1: i32, %arg2: memref<1x16x128xbf16, #tpu.memory_space<vmem>>, %arg3: memref<128x384xbf16, #tpu.memory_space<vmem>>, %arg4: memref<16x256xf32, #tpu.memory_space<vmem>>, %arg5: memref<16x256xf32, #tpu.memory_space<vmem>>, %arg6: memref<16x256xf32, #tpu.memory_space<vmem>>, %arg7: memref<1x16x128xbf16, #tpu.memory_space<vmem>>, %arg8: memref<1x16x128xbf16, #tpu.memory_space<vmem>>, %arg9: memref<1x16x128xbf16, #tpu.memory_space<vmem>>) attributes {dimension_semantics = [#tpu.dimension_semantics<parallel>, #tpu.dimension_semantics<parallel>], iteration_bounds = array<i64: 2, 1>, scalar_prefetch = 0 : i64, scratch_operands = 0 : i64, tpu.core_type = #tpu.core_type<tc>, window_params = [{transform_indices = @transform_0, window_bounds = array<i64: 1, 16, 128>}, {pipeline_mode = #tpu.pipeline_mode<synchronous>, transform_indices = @transform_1, window_bounds = array<i64: 128, 384>}, {transform_indices = @transform_2, window_bounds = array<i64: 16, 256>}, {transform_indices = @transform_3, window_bounds = array<i64: 16, 256>}, {transform_indices = @transform_4, window_bounds = array<i64: 16, 256>}, {transform_indices = @transform_5, window_bounds = array<i64: 1, 16, 128>}, {transform_indices = @transform_6, window_bounds = array<i64: 1, 16, 128>}, {transform_indices = @transform_7, window_bounds = array<i64: 1, 16, 128>}]} {
    %c0 = arith.constant 0 : index
    %c0_0 = arith.constant 0 : index
    %c0_1 = arith.constant 0 : index
    %0 = vector.load %arg2[%c0, %c0_0, %c0_1] : memref<1x16x128xbf16, #tpu.memory_space<vmem>>, vector<1x16x128xbf16>
    %1 = vector.shape_cast %0 : vector<1x16x128xbf16> to vector<16x128xbf16>
    %c0_2 = arith.constant 0 : index
    %c0_3 = arith.constant 0 : index
    %2 = vector.load %arg3[%c0_2, %c0_3] : memref<128x384xbf16, #tpu.memory_space<vmem>>, vector<128x384xbf16>
    %cst = arith.constant dense<0.000000e+00> : vector<16x384xf32>
    %3 = tpu.matmul %1, %2, %cst {dimension_numbers = #tpu.dot_dimension_numbers<[1], [0], [0], [1], [0, 0, 1, 1], [], []>} : vector<16x128xbf16>, vector<128x384xbf16>, vector<16x384xf32> -> vector<16x384xf32>
    %4 = vector.extract_strided_slice %3 {offsets = [0, 0], sizes = [16, 256], strides = [1, 1]} : vector<16x384xf32> to vector<16x256xf32>
    %c240_i32 = arith.constant 240 : i32
    %5 = tpu.dynamic_rotate %4 by %c240_i32 dim 1 : vector<16x256xf32>, i32 -> vector<16x256xf32>
    %c16_i32 = arith.constant 16 : i32
    %6 = tpu.dynamic_rotate %4 by %c16_i32 dim 1 : vector<16x256xf32>, i32 -> vector<16x256xf32>
    %c0_4 = arith.constant 0 : index
    %c0_5 = arith.constant 0 : index
    %7 = vector.load %arg4[%c0_4, %c0_5] : memref<16x256xf32, #tpu.memory_space<vmem>>, vector<16x256xf32>
    %8 = arith.mulf %4, %7 : vector<16x256xf32>
    %c0_6 = arith.constant 0 : index
    %c0_7 = arith.constant 0 : index
    %9 = vector.load %arg5[%c0_6, %c0_7] : memref<16x256xf32, #tpu.memory_space<vmem>>, vector<16x256xf32>
    %10 = arith.mulf %5, %9 : vector<16x256xf32>
    %11 = arith.addf %8, %10 : vector<16x256xf32>
    %c0_8 = arith.constant 0 : index
    %c0_9 = arith.constant 0 : index
    %12 = vector.load %arg6[%c0_8, %c0_9] : memref<16x256xf32, #tpu.memory_space<vmem>>, vector<16x256xf32>
    %13 = arith.mulf %6, %12 : vector<16x256xf32>
    %14 = arith.addf %11, %13 : vector<16x256xf32>
    %15 = vector.extract_strided_slice %14 {offsets = [0, 0], sizes = [16, 128], strides = [1, 1]} : vector<16x256xf32> to vector<16x128xf32>
    %16 = arith.truncf %15 : vector<16x128xf32> to vector<16x128xbf16>
    %c0_10 = arith.constant 0 : index
    %c0_11 = arith.constant 0 : index
    %c0_12 = arith.constant 0 : index
    %17 = vector.load %arg7[%c0_10, %c0_11, %c0_12] : memref<1x16x128xbf16, #tpu.memory_space<vmem>>, vector<1x16x128xbf16>
    %18 = vector.shape_cast %17 : vector<1x16x128xbf16> to vector<16x128xbf16>
    %19 = vector.shape_cast %16 : vector<16x128xbf16> to vector<1x16x128xbf16>
    tpu.vector_store %arg7[%c0_10, %c0_11, %c0_12], %19 {strides = array<i32>} : memref<1x16x128xbf16, #tpu.memory_space<vmem>>, vector<1x16x128xbf16>,
    %20 = vector.extract_strided_slice %14 {offsets = [0, 128], sizes = [16, 128], strides = [1, 1]} : vector<16x256xf32> to vector<16x128xf32>
    %21 = arith.truncf %20 : vector<16x128xf32> to vector<16x128xbf16>
    %c0_13 = arith.constant 0 : index
    %c0_14 = arith.constant 0 : index
    %c0_15 = arith.constant 0 : index
    %22 = vector.load %arg8[%c0_13, %c0_14, %c0_15] : memref<1x16x128xbf16, #tpu.memory_space<vmem>>, vector<1x16x128xbf16>
    %23 = vector.shape_cast %22 : vector<1x16x128xbf16> to vector<16x128xbf16>
    %24 = vector.shape_cast %21 : vector<16x128xbf16> to vector<1x16x128xbf16>
    tpu.vector_store %arg8[%c0_13, %c0_14, %c0_15], %24 {strides = array<i32>} : memref<1x16x128xbf16, #tpu.memory_space<vmem>>, vector<1x16x128xbf16>,
    %25 = vector.extract_strided_slice %3 {offsets = [0, 256], sizes = [16, 128], strides = [1, 1]} : vector<16x384xf32> to vector<16x128xf32>
    %26 = arith.truncf %25 : vector<16x128xf32> to vector<16x128xbf16>
    %c0_16 = arith.constant 0 : index
    %c0_17 = arith.constant 0 : index
    %c0_18 = arith.constant 0 : index
    %27 = vector.load %arg9[%c0_16, %c0_17, %c0_18] : memref<1x16x128xbf16, #tpu.memory_space<vmem>>, vector<1x16x128xbf16>
    %28 = vector.shape_cast %27 : vector<1x16x128xbf16> to vector<16x128xbf16>
    %29 = vector.shape_cast %26 : vector<16x128xbf16> to vector<1x16x128xbf16>
    tpu.vector_store %arg9[%c0_16, %c0_17, %c0_18], %29 {strides = array<i32>} : memref<1x16x128xbf16, #tpu.memory_space<vmem>>, vector<1x16x128xbf16>,
    return
  }
  func.func @transform_0(%arg0: i32, %arg1: i32) -> (i32, i32, i32) {
    %c0_i32 = arith.constant 0 : i32
    %c0_i32_0 = arith.constant 0 : i32
    return %arg0, %arg1, %c0_i32 : i32, i32, i32
  }
  func.func @transform_1(%arg0: i32, %arg1: i32) -> (i32, i32) {
    %c0_i32 = arith.constant 0 : i32
    %c0_i32_0 = arith.constant 0 : i32
    %c0_i32_1 = arith.constant 0 : i32
    return %c0_i32, %c0_i32_0 : i32, i32
  }
  func.func @transform_2(%arg0: i32, %arg1: i32) -> (i32, i32) {
    %c0_i32 = arith.constant 0 : i32
    %c0_i32_0 = arith.constant 0 : i32
    return %arg1, %c0_i32 : i32, i32
  }
  func.func @transform_3(%arg0: i32, %arg1: i32) -> (i32, i32) {
    %c0_i32 = arith.constant 0 : i32
    %c0_i32_0 = arith.constant 0 : i32
    return %arg1, %c0_i32 : i32, i32
  }
  func.func @transform_4(%arg0: i32, %arg1: i32) -> (i32, i32) {
    %c0_i32 = arith.constant 0 : i32
    %c0_i32_0 = arith.constant 0 : i32
    return %arg1, %c0_i32 : i32, i32
  }
  func.func @transform_5(%arg0: i32, %arg1: i32) -> (i32, i32, i32) {
    %c0_i32 = arith.constant 0 : i32
    %c0_i32_0 = arith.constant 0 : i32
    return %arg0, %arg1, %c0_i32 : i32, i32, i32
  }
  func.func @transform_6(%arg0: i32, %arg1: i32) -> (i32, i32, i32) {
    %c0_i32 = arith.constant 0 : i32
    %c0_i32_0 = arith.constant 0 : i32
    return %arg0, %arg1, %c0_i32 : i32, i32, i32
  }
  func.func @transform_7(%arg0: i32, %arg1: i32) -> (i32, i32, i32) {
    %c0_i32 = arith.constant 0 : i32
    %c0_i32_0 = arith.constant 0 : i32
    return %arg0, %arg1, %c0_i32 : i32, i32, i32
  }
}

</mosaic_0001>

<llo_original>
// kernel: tpu_custom_call.1
$region0: #{tpu_custom_call.1}
  #allocation0 [shape = 'u32[]', space=smem, size = 0x4, offset = 0x4, fixed_abs, tag = 'smem constant byte address 0x4 - core index']
  #allocation1 [shape = 'u32[72,128]{1,0:T(1,128)}', space=vmem, size = 0x9000, scoped, tag = 'internal scratch']
  %s0 = inlined_call_operand.hbm [shape: bf16[2,16,128], index: 0, kind: input, shape index: {}]
  %s1 = inlined_call_operand.hbm [shape: bf16[128,384], index: 1, kind: input, shape index: {}]
  %s2 = inlined_call_operand.hbm [shape: f32[16,256], index: 2, kind: input, shape index: {}]
  %s3 = inlined_call_operand.hbm [shape: f32[16,256], index: 3, kind: input, shape index: {}]
  %s4 = inlined_call_operand.hbm [shape: f32[16,256], index: 4, kind: input, shape index: {}]
  %s5 = inlined_call_operand.hbm [shape: bf16[2,16,128], index: 5, kind: output, shape index: {0}]
  %s6 = inlined_call_operand.hbm [shape: bf16[2,16,128], index: 6, kind: output, shape index: {1}]
  %s7 = inlined_call_operand.hbm [shape: bf16[2,16,128], index: 7, kind: output, shape index: {2}]
  %8 = xla_tuple %s5, %s6, %s7
  %s9 = sld [smem:[#allocation0]]
  $region89: #{tpu_custom_call.1} parent=0
    _
  %s11 = ssub.s32 1, %s9
  %s12 = scalar_select 0, %s11, %s9
  $region1: #{tpu_custom_call.1} parent=0
    #allocation2 [shape = 'u8[8192]{0}', space=vmem, size = 0x2000, scoped, tag = 'input window, operand 0']
    #allocation3 [shape = 's32[2]{0}', space=sflag, size = 0x8, scoped, tag = 'scoped memory for tpu_custom_call.1']
    #allocation4 [shape = 's32[2]{0}', space=sflag, size = 0x8, scoped, tag = 'scoped memory for tpu_custom_call.1']
    #allocation5 [shape = 'u8[98304]{0}', space=vmem, size = 0x18000, scoped, tag = 'input window, operand 1, single buffered']
    #allocation6 [shape = 's32[1]{0}', space=sflag, size = 0x4, scoped, tag = 'scoped memory for tpu_custom_call.1']
    #allocation7 [shape = 'u8[16384]{0}', space=vmem, size = 0x4000, scoped, tag = 'input window, operand 2, single buffered']
    #allocation8 [shape = 'u8[16384]{0}', space=vmem, size = 0x4000, scoped, tag = 'input window, operand 3, single buffered']
    #allocation9 [shape = 's32[1]{0}', space=sflag, size = 0x4, scoped, tag = 'scoped memory for tpu_custom_call.1']
    #allocation10 [shape = 'u8[16384]{0}', space=vmem, size = 0x4000, scoped, tag = 'input window, operand 4, single buffered']
    #allocation11 [shape = 'u8[8192]{0}', space=vmem, size = 0x2000, scoped, tag = 'output window, operand 0']
    #allocation12 [shape = 'u8[8192]{0}', space=vmem, size = 0x2000, scoped, tag = 'output window, operand 1']
    #allocation13 [shape = 's32[2]{0}', space=sflag, size = 0x8, scoped, tag = 'scoped memory for tpu_custom_call.1']
    #allocation14 [shape = 'u8[8192]{0}', space=vmem, size = 0x2000, scoped, tag = 'output window, operand 2']
    %13 = vsyncpa [#allocation3], 0
    %s14 = scalar_lea.sflag [#allocation3], 1
    %15 = vsyncpa %s14, 0
    %16 = vsyncpa [#allocation6], 0
    %17 = vsyncpa [#allocation9], 0
    %18 = vsyncpa [#allocation4], 0
    %s19 = scalar_lea.sflag [#allocation4], 1
    %20 = vsyncpa %s19, 0
    %21 = vsyncpa [#allocation13], 0
    %s22 = scalar_lea.sflag [#allocation13], 1
    %23 = vsyncpa %s22, 0
    loop: start=0, step=1, limit=4
    $region2: #{tpu_custom_call.1} parent=1 // loop_pre_header
      _
    $region3: #{tpu_custom_call.1} parent=1 // loop_header
      %s25 = sphi 0, %s29
      %p26 = scmp.ge.s32.totalorder %s25, 4
      %s32 = sphi 0, %s44
      %s33 = sphi 0, %s40
      %s34 = sphi 0, %s32
      %s35 = sphi 0, %s33
      %s36 = sphi 0, %s34
      %s37 = sphi 0, %s35
      %s49 = sphi 0, %s51
      %s52 = sphi 0, %s49
      %s53 = sphi 0, %s52
      %s69 = sphi 0, %s53
      %s73 = sphi 0, %s73
      %s75 = sphi 0, %s73
      %s76 = sphi 0, %s75
      %s90 = sphi 0, %s76
      %s96 = sphi 0, %s98
      %s99 = sphi 0, %s96
      %s100 = sphi 0, %s99
      %s116 = sphi 0, %s100
      %s122 = sphi 0, %s124
      %s125 = sphi 0, %s122
      %s126 = sphi 0, %s125
      %s142 = sphi 0, %s126
      %s148 = sphi 0, %s150
      %s151 = sphi 0, %s148
      %s152 = sphi 0, %s151
      %s168 = sphi 0, %s152
      %s176 = sphi 0, %s178
      %s179 = sphi 0, %s176
      %s180 = sphi 0, %s179
      %s196 = sphi 0, %s180
      %s204 = sphi 0, %s206
      %s207 = sphi 0, %s204
      %s208 = sphi 0, %s207
      %s224 = sphi 0, %s208
      %s232 = sphi 0, %s234
      %s235 = sphi 0, %s232
      %s236 = sphi 0, %s235
      %s252 = sphi 0, %s236
    $region4: #{tpu_custom_call.1} parent=1 // loop_header_branch
      %28 = sbr.rel (%p26) target = $region8
    $region5: #{tpu_custom_call.1} parent=1 // loop_body
      %s30 = ssub.s32 %s25, 1
      %s31 = ssub.s32 %s25, 2
      %s38 = sadd.s32 1, %s33
      %p39 = scmp.ge.s32.totalorder %s38, 1
      %s40 = scalar_select %p39, 0, %s38
      %s41 = sadd.s32 1, %s32
      %s42 = scalar_select %p39, %s41, %s32
      %p43 = scmp.ge.s32.totalorder %s42, 2
      %s44 = scalar_select %p43, 0, %s42
      %s45 = ssub.s32 %s32, %s44
      %s46 = ssub.s32 %s33, %s40
      %s47 = sor.u32 %s45, %s46
      %p48 = scmp.eq.s32.totalorder %s47, 0
      %s50 = sadd.s32 %s49, 1
      %s51 = scalar_select %p48, %s49, %s50
      %p54 = pneg %p48
      %p55 = scmp.eq.s32.totalorder %s25, 1
      %p56 = por %p54, %p55
      %p57 = scmp.ne.s32.totalorder %s49, %s52
      %p58 = scmp.eq.s32.totalorder %s25, 0
      %p59 = por %p57, %p58
      %p60 = scmp.ne.s32.totalorder %s49, %s52
      %p61 = scmp.eq.s32.totalorder %s30, 1
      %p62 = por %p60, %p61
      %p63 = scmp.ne.s32.totalorder %s52, %s53
      %p64 = scmp.eq.s32.totalorder %s30, 0
      %p65 = por %p63, %p64
      %p66 = scmp.ne.s32.totalorder %s52, %s53
      %p67 = scmp.eq.s32.totalorder %s31, 1
      %p68 = por %p66, %p67
      %p70 = scmp.ne.s32.totalorder %s53, %s69
      %p71 = scmp.eq.s32.totalorder %s31, 0
      %p72 = por %p70, %p71
      %s74 = sadd.s32 %s73, 1
      %p77 = scmp.eq.s32.totalorder %s25, 1
      %p78 = scmp.ne.s32.totalorder %s73, %s75
      %p79 = scmp.eq.s32.totalorder %s25, 0
      %p80 = por %p78, %p79
      %p81 = scmp.ne.s32.totalorder %s73, %s75
      %p82 = scmp.eq.s32.totalorder %s30, 1
      %p83 = por %p81, %p82
      %p84 = scmp.ne.s32.totalorder %s75, %s76
      %p85 = scmp.eq.s32.totalorder %s30, 0
      %p86 = por %p84, %p85
      %p87 = scmp.ne.s32.totalorder %s75, %s76
      %p88 = scmp.eq.s32.totalorder %s31, 1
      %p89 = por %p87, %p88
      %p91 = scmp.ne.s32.totalorder %s76, %s90
      %p92 = scmp.eq.s32.totalorder %s31, 0
      %p93 = por %p91, %p92
      %s94 = ssub.s32 %s33, %s40
      %p95 = scmp.eq.s32.totalorder %s94, 0
      %s97 = sadd.s32 %s96, 1
      %s98 = scalar_select %p95, %s96, %s97
      %p101 = pneg %p95
      %p102 = scmp.eq.s32.totalorder %s25, 1
      %p103 = por %p101, %p102
      %p104 = scmp.ne.s32.totalorder %s96, %s99
      %p105 = scmp.eq.s32.totalorder %s25, 0
      %p106 = por %p104, %p105
      %p107 = scmp.ne.s32.totalorder %s96, %s99
      %p108 = scmp.eq.s32.totalorder %s30, 1
      %p109 = por %p107, %p108
      %p110 = scmp.ne.s32.totalorder %s99, %s100
      %p111 = scmp.eq.s32.totalorder %s30, 0
      %p112 = por %p110, %p111
      %p113 = scmp.ne.s32.totalorder %s99, %s100
      %p114 = scmp.eq.s32.totalorder %s31, 1
      %p115 = por %p113, %p114
      %p117 = scmp.ne.s32.totalorder %s100, %s116
      %p118 = scmp.eq.s32.totalorder %s31, 0
      %p119 = por %p117, %p118
      %s120 = ssub.s32 %s33, %s40
      %p121 = scmp.eq.s32.totalorder %s120, 0
      %s123 = sadd.s32 %s122, 1
      %s124 = scalar_select %p121, %s122, %s123
      %p127 = pneg %p121
      %p128 = scmp.eq.s32.totalorder %s25, 1
      %p129 = por %p127, %p128
      %p130 = scmp.ne.s32.totalorder %s122, %s125
      %p131 = scmp.eq.s32.totalorder %s25, 0
      %p132 = por %p130, %p131
      %p133 = scmp.ne.s32.totalorder %s122, %s125
      %p134 = scmp.eq.s32.totalorder %s30, 1
      %p135 = por %p133, %p134
      %p136 = scmp.ne.s32.totalorder %s125, %s126
      %p137 = scmp.eq.s32.totalorder %s30, 0
      %p138 = por %p136, %p137
      %p139 = scmp.ne.s32.totalorder %s125, %s126
      %p140 = scmp.eq.s32.totalorder %s31, 1
      %p141 = por %p139, %p140
      %p143 = scmp.ne.s32.totalorder %s126, %s142
      %p144 = scmp.eq.s32.totalorder %s31, 0
      %p145 = por %p143, %p144
      %s146 = ssub.s32 %s33, %s40
      %p147 = scmp.eq.s32.totalorder %s146, 0
      %s149 = sadd.s32 %s148, 1
      %s150 = scalar_select %p147, %s148, %s149
      %p153 = pneg %p147
      %p154 = scmp.eq.s32.totalorder %s25, 1
      %p155 = por %p153, %p154
      %p156 = scmp.ne.s32.totalorder %s148, %s151
      %p157 = scmp.eq.s32.totalorder %s25, 0
      %p158 = por %p156, %p157
      %p159 = scmp.ne.s32.totalorder %s148, %s151
      %p160 = scmp.eq.s32.totalorder %s30, 1
      %p161 = por %p159, %p160
      %p162 = scmp.ne.s32.totalorder %s151, %s152
      %p163 = scmp.eq.s32.totalorder %s30, 0
      %p164 = por %p162, %p163
      %p165 = scmp.ne.s32.totalorder %s151, %s152
      %p166 = scmp.eq.s32.totalorder %s31, 1
      %p167 = por %p165, %p166
      %p169 = scmp.ne.s32.totalorder %s152, %s168
      %p170 = scmp.eq.s32.totalorder %s31, 0
      %p171 = por %p169, %p170
      %s172 = ssub.s32 %s32, %s44
      %s173 = ssub.s32 %s33, %s40
      %s174 = sor.u32 %s172, %s173
      %p175 = scmp.eq.s32.totalorder %s174, 0
      %s177 = sadd.s32 %s176, 1
      %s178 = scalar_select %p175, %s176, %s177
      %p181 = pneg %p175
      %p182 = scmp.eq.s32.totalorder %s25, 1
      %p183 = por %p181, %p182
      %p184 = scmp.ne.s32.totalorder %s176, %s179
      %p185 = scmp.eq.s32.totalorder %s25, 0
      %p186 = por %p184, %p185
      %p187 = scmp.ne.s32.totalorder %s176, %s179
      %p188 = scmp.eq.s32.totalorder %s30, 1
      %p189 = por %p187, %p188
      %p190 = scmp.ne.s32.totalorder %s179, %s180
      %p191 = scmp.eq.s32.totalorder %s30, 0
      %p192 = por %p190, %p191
      %p193 = scmp.ne.s32.totalorder %s179, %s180
      %p194 = scmp.eq.s32.totalorder %s31, 1
      %p195 = por %p193, %p194
      %p197 = scmp.ne.s32.totalorder %s180, %s196
      %p198 = scmp.eq.s32.totalorder %s31, 0
      %p199 = por %p197, %p198
      %s200 = ssub.s32 %s32, %s44
      %s201 = ssub.s32 %s33, %s40
      %s202 = sor.u32 %s200, %s201
      %p203 = scmp.eq.s32.totalorder %s202, 0
      %s205 = sadd.s32 %s204, 1
      %s206 = scalar_select %p203, %s204, %s205
      %p209 = pneg %p203
      %p210 = scmp.eq.s32.totalorder %s25, 1
      %p211 = por %p209, %p210
      %p212 = scmp.ne.s32.totalorder %s204, %s207
      %p213 = scmp.eq.s32.totalorder %s25, 0
      %p214 = por %p212, %p213
      %p215 = scmp.ne.s32.totalorder %s204, %s207
      %p216 = scmp.eq.s32.totalorder %s30, 1
      %p217 = por %p215, %p216
      %p218 = scmp.ne.s32.totalorder %s207, %s208
      %p219 = scmp.eq.s32.totalorder %s30, 0
      %p220 = por %p218, %p219
      %p221 = scmp.ne.s32.totalorder %s207, %s208
      %p222 = scmp.eq.s32.totalorder %s31, 1
      %p223 = por %p221, %p222
      %p225 = scmp.ne.s32.totalorder %s208, %s224
      %p226 = scmp.eq.s32.totalorder %s31, 0
      %p227 = por %p225, %p226
      %s228 = ssub.s32 %s32, %s44
      %s229 = ssub.s32 %s33, %s40
      %s230 = sor.u32 %s228, %s229
      %p231 = scmp.eq.s32.totalorder %s230, 0
      %s233 = sadd.s32 %s232, 1
      %s234 = scalar_select %p231, %s232, %s233
      %p237 = pneg %p231
      %p238 = scmp.eq.s32.totalorder %s25, 1
      %p239 = por %p237, %p238
      %p240 = scmp.ne.s32.totalorder %s232, %s235
      %p241 = scmp.eq.s32.totalorder %s25, 0
      %p242 = por %p240, %p241
      %p243 = scmp.ne.s32.totalorder %s232, %s235
      %p244 = scmp.eq.s32.totalorder %s30, 1
      %p245 = por %p243, %p244
      %p246 = scmp.ne.s32.totalorder %s235, %s236
      %p247 = scmp.eq.s32.totalorder %s30, 0
      %p248 = por %p246, %p247
      %p249 = scmp.ne.s32.totalorder %s235, %s236
      %p250 = scmp.eq.s32.totalorder %s31, 1
      %p251 = por %p249, %p250
      %p253 = scmp.ne.s32.totalorder %s236, %s252
      %p254 = scmp.eq.s32.totalorder %s31, 0
      %p255 = por %p253, %p254
      %p256 = scmp.le.s32.totalorder 1, %s25
      %p257 = scmp.lt.s32.totalorder %s25, 3
      %p258 = pnand %p256, %p257
      %p259 = pneg %p258
      // Predicated region
      $region9: #{tpu_custom_call.1} parent=5 // pred_check
        _
      $region10: #{tpu_custom_call.1} parent=5 // pred_check_branch
        %261 = sbr.rel (%p258) target = $region12
      $region11: #{tpu_custom_call.1} parent=5 // pred_region
        %s262 = ssub.s32 %s25, 1
        // Predicated region
        $region13: #{tpu_custom_call.1} parent=11 // pred_check
          %p263 = pneg %p86
        $region14: #{tpu_custom_call.1} parent=11 // pred_check_branch
          %265 = sbr.rel (%p263) target = $region16
        $region15: #{tpu_custom_call.1} parent=11 // pred_region
          %267 = vsyncadd [#allocation6], 0
          %s268 = sshll.u32 %s1, 4
          %s269 = int_to_ptr.hbm [resolvable:$true] %s268
          %s270 = sshll.u32 [#allocation5], 4
          %s271 = int_to_ptr.vmem [resolvable:$true] %s270
          %276 = dma.hbm_to_vmem [thread:$0]  %s269, 3072, %s271, [#allocation6], 192, 192, 12
        $region16: #{tpu_custom_call.1} parent=11 // pred_fallthru
          _
        // Predicated region
        $region17: #{tpu_custom_call.1} parent=11 // pred_check
          %p277 = pneg %p112
        $region18: #{tpu_custom_call.1} parent=11 // pred_check_branch
          %279 = sbr.rel (%p277) target = $region20
        $region19: #{tpu_custom_call.1} parent=11 // pred_region
          %s280 = smul.u32 2, %s35
          %282 = vsyncadd [#allocation6], 0
          %s283 = smul.addr %s280, 2
          %s284 = smul.addr %s283, 8
          %s285 = scalar_lea.hbm %s2, %s284
          %s286 = sshll.u32 %s285, 4
          %s287 = int_to_ptr.hbm [resolvable:$true] %s286
          %s288 = sshll.u32 [#allocation7], 4
          %s289 = int_to_ptr.vmem [resolvable:$true] %s288
          %294 = dma.hbm_to_vmem [thread:$0]  %s287, 512, %s289, [#allocation6], 256, 256, 16
        $region20: #{tpu_custom_call.1} parent=11 // pred_fallthru
          _
        // Predicated region
        $region21: #{tpu_custom_call.1} parent=11 // pred_check
          %p295 = pneg %p138
        $region22: #{tpu_custom_call.1} parent=11 // pred_check_branch
          %297 = sbr.rel (%p295) target = $region24
        $region23: #{tpu_custom_call.1} parent=11 // pred_region
          %s298 = smul.u32 2, %s35
          %300 = vsyncadd [#allocation9], 0
          %s301 = smul.addr %s298, 2
          %s302 = smul.addr %s301, 8
          %s303 = scalar_lea.hbm %s3, %s302
          %s304 = sshll.u32 %s303, 4
          %s305 = int_to_ptr.hbm [resolvable:$true] %s304
          %s306 = sshll.u32 [#allocation8], 4
          %s307 = int_to_ptr.vmem [resolvable:$true] %s306
          %312 = dma.hbm_to_vmem [thread:$0]  %s305, 512, %s307, [#allocation9], 256, 256, 16
        $region24: #{tpu_custom_call.1} parent=11 // pred_fallthru
          _
        // Predicated region
        $region25: #{tpu_custom_call.1} parent=11 // pred_check
          %p313 = pneg %p164
        $region26: #{tpu_custom_call.1} parent=11 // pred_check_branch
          %315 = sbr.rel (%p313) target = $region28
        $region27: #{tpu_custom_call.1} parent=11 // pred_region
          %s316 = smul.u32 2, %s35
          %318 = vsyncadd [#allocation9], 0
          %s319 = smul.addr %s316, 2
          %s320 = smul.addr %s319, 8
          %s321 = scalar_lea.hbm %s4, %s320
          %s322 = sshll.u32 %s321, 4
          %s323 = int_to_ptr.hbm [resolvable:$true] %s322
          %s324 = sshll.u32 [#allocation10], 4
          %s325 = int_to_ptr.vmem [resolvable:$true] %s324
          %330 = dma.hbm_to_vmem [thread:$0]  %s323, 512, %s325, [#allocation9], 256, 256, 16
        $region28: #{tpu_custom_call.1} parent=11 // pred_fallthru
          _
      $region12: #{tpu_custom_call.1} parent=5 // pred_fallthru
        _
      %p331 = scmp.lt.s32.totalorder %s25, 2
      // Predicated region
      $region29: #{tpu_custom_call.1} parent=5 // pred_check
        %p332 = pneg %p331
      $region30: #{tpu_custom_call.1} parent=5 // pred_check_branch
        %334 = sbr.rel (%p332) target = $region32
      $region31: #{tpu_custom_call.1} parent=5 // pred_region
        // Predicated region
        $region33: #{tpu_custom_call.1} parent=31 // pred_check
          %p335 = pneg %p59
        $region34: #{tpu_custom_call.1} parent=31 // pred_check_branch
          %337 = sbr.rel (%p335) target = $region36
        $region35: #{tpu_custom_call.1} parent=31 // pred_region
          %s338 = sand.u32 %s49, 1
          %s339 = scalar_lea.sflag [#allocation3], %s338
          %s340 = sand.u32 %s49, 1
          %s341 = smul.addr %s340, 8
          %s342 = scalar_lea.vmem [#allocation2], %s341
          %s343 = smul.u32 2, %s33
          %345 = vsyncadd %s339, 0
          %s346 = smul.addr %s32, 2
          %s347 = sadd.s32 %s343, %s346
          %s348 = smul.addr %s347, 4
          %s349 = scalar_lea.hbm %s0, %s348
          %s350 = sshll.u32 %s349, 4
          %s351 = int_to_ptr.hbm [resolvable:$true] %s350
          %s352 = sshll.u32 %s342, 4
          %s353 = int_to_ptr.vmem [resolvable:$true] %s352
          %358 = dma.hbm_to_vmem [thread:$0]  %s351, 128, %s353, %s339, 64, 64, 4
        $region36: #{tpu_custom_call.1} parent=31 // pred_fallthru
          _
      $region32: #{tpu_custom_call.1} parent=5 // pred_fallthru
        _
      %p359 = scmp.le.s32.totalorder 1, %s25
      %p360 = scmp.lt.s32.totalorder %s25, 3
      %p361 = pnand %p359, %p360
      %p362 = pneg %p361
      // Predicated region
      $region37: #{tpu_custom_call.1} parent=5 // pred_check
        _
      $region38: #{tpu_custom_call.1} parent=5 // pred_check_branch
        %364 = sbr.rel (%p361) target = $region40
      $region39: #{tpu_custom_call.1} parent=5 // pred_region
        %s365 = ssub.s32 %s25, 1
        %s366 = sand.u32 %s52, 1
        %s367 = scalar_lea.sflag [#allocation3], %s366
        %s368 = sand.u32 %s52, 1
        %s369 = smul.addr %s368, 8
        %s370 = scalar_lea.vmem [#allocation2], %s369
        // Predicated region
        $region41: #{tpu_custom_call.1} parent=39 // pred_check
          %p371 = pneg %p65
        $region42: #{tpu_custom_call.1} parent=39 // pred_check_branch
          %373 = sbr.rel (%p371) target = $region44
        $region43: #{tpu_custom_call.1} parent=39 // pred_region
          %375 = dma.done %s367, 128
        $region44: #{tpu_custom_call.1} parent=39 // pred_fallthru
          _
        // Predicated region
        $region45: #{tpu_custom_call.1} parent=39 // pred_check
          %p376 = pneg %p86
        $region46: #{tpu_custom_call.1} parent=39 // pred_check_branch
          %378 = sbr.rel (%p376) target = $region48
        $region47: #{tpu_custom_call.1} parent=39 // pred_region
          %380 = dma.done [#allocation6], 3072
        $region48: #{tpu_custom_call.1} parent=39 // pred_fallthru
          _
        // Predicated region
        $region49: #{tpu_custom_call.1} parent=39 // pred_check
          %p381 = pneg %p112
        $region50: #{tpu_custom_call.1} parent=39 // pred_check_branch
          %383 = sbr.rel (%p381) target = $region52
        $region51: #{tpu_custom_call.1} parent=39 // pred_region
          %385 = dma.done [#allocation6], 512
        $region52: #{tpu_custom_call.1} parent=39 // pred_fallthru
          _
        // Predicated region
        $region53: #{tpu_custom_call.1} parent=39 // pred_check
          %p386 = pneg %p138
        $region54: #{tpu_custom_call.1} parent=39 // pred_check_branch
          %388 = sbr.rel (%p386) target = $region56
        $region55: #{tpu_custom_call.1} parent=39 // pred_region
          %390 = dma.done [#allocation9], 512
        $region56: #{tpu_custom_call.1} parent=39 // pred_fallthru
          _
        // Predicated region
        $region57: #{tpu_custom_call.1} parent=39 // pred_check
          %p391 = pneg %p164
        $region58: #{tpu_custom_call.1} parent=39 // pred_check_branch
          %393 = sbr.rel (%p391) target = $region60
        $region59: #{tpu_custom_call.1} parent=39 // pred_region
          %395 = dma.done [#allocation9], 512
        $region60: #{tpu_custom_call.1} parent=39 // pred_fallthru
          _
        %s396 = sand.u32 %s52, 1
        %s397 = scalar_lea.sflag [#allocation3], %s396
        %s398 = sand.u32 %s52, 1
        %s399 = smul.addr %s398, 8
        %s400 = scalar_lea.vmem [#allocation2], %s399
        %p401 = pneg %p65
        %p402 = pneg %p62
        %p403 = pneg %p86
        %p404 = pneg %p83
        %p405 = pneg %p112
        %p406 = pneg %p109
        %p407 = pneg %p138
        %p408 = pneg %p135
        %p409 = pneg %p164
        %p410 = pneg %p161
        %p411 = pneg %p192
        %p412 = pneg %p189
        %s413 = sand.u32 %s179, 1
        %s414 = scalar_lea.sflag [#allocation4], %s413
        %s415 = sand.u32 %s179, 1
        %s416 = smul.addr %s415, 8
        %s417 = scalar_lea.vmem [#allocation11], %s416
        %p418 = pneg %p220
        %p419 = pneg %p217
        %s420 = sand.u32 %s30, 1
        %s421 = scalar_lea.sflag [#allocation13], %s420
        %s422 = sand.u32 %s207, 1
        %s423 = smul.addr %s422, 8
        %s424 = scalar_lea.vmem [#allocation12], %s423
        %p425 = pneg %p248
        %p426 = pneg %p245
        %s427 = sand.u32 %s30, 1
        %s428 = scalar_lea.sflag [#allocation13], %s427
        %s429 = sand.u32 %s235, 1
        %s430 = smul.addr %s429, 8
        %s431 = scalar_lea.vmem [#allocation14], %s430
        %s432 = smul.u32 2, %s35
        %s433 = smul.u32 2, %s35
        %s434 = smul.u32 2, %s35
        %s435 = smul.u32 2, %s35
        %s436 = smul.u32 2, %s35
        %s437 = smul.u32 2, %s35
        %s438 = smul.u32 2, %s35
        %v439 = vld [vmem:[%s370] sm:$0xf]
        %v440 = vld [vmem:[%s370 + $0x4] sm:$0xf]
        %v441 = vld [vmem:[#allocation5] sm:$0xff]
        %v442 = vld [vmem:[#allocation5 + $0x8] sm:$0xf]
        %v443 = vld [vmem:[#allocation5 + $0xc] sm:$0xff]
        %v444 = vld [vmem:[#allocation5 + $0x14] sm:$0xf]
        %v445 = vld [vmem:[#allocation5 + $0x18] sm:$0xff]
        %v446 = vld [vmem:[#allocation5 + $0x20] sm:$0xf]
        %v447 = vld [vmem:[#allocation5 + $0x24] sm:$0xff]
        %v448 = vld [vmem:[#allocation5 + $0x2c] sm:$0xf]
        %v449 = vld [vmem:[#allocation5 + $0x30] sm:$0xff]
        %v450 = vld [vmem:[#allocation5 + $0x38] sm:$0xf]
        %v451 = vld [vmem:[#allocation5 + $0x3c] sm:$0xff]
        %v452 = vld [vmem:[#allocation5 + $0x44] sm:$0xf]
        %v453 = vld [vmem:[#allocation5 + $0x48] sm:$0xff]
        %v454 = vld [vmem:[#allocation5 + $0x50] sm:$0xf]
        %v455 = vld [vmem:[#allocation5 + $0x54] sm:$0xff]
        %v456 = vld [vmem:[#allocation5 + $0x5c] sm:$0xf]
        %v457 = vld [vmem:[#allocation5 + $0x60] sm:$0xff]
        %v458 = vld [vmem:[#allocation5 + $0x68] sm:$0xf]
        %v459 = vld [vmem:[#allocation5 + $0x6c] sm:$0xff]
        %v460 = vld [vmem:[#allocation5 + $0x74] sm:$0xf]
        %v461 = vld [vmem:[#allocation5 + $0x78] sm:$0xff]
        %v462 = vld [vmem:[#allocation5 + $0x80] sm:$0xf]
        %v463 = vld [vmem:[#allocation5 + $0x84] sm:$0xff]
        %v464 = vld [vmem:[#allocation5 + $0x8c] sm:$0xf]
        %v465 = vld [vmem:[#allocation5 + $0x90] sm:$0xff]
        %v466 = vld [vmem:[#allocation5 + $0x98] sm:$0xf]
        %v467 = vld [vmem:[#allocation5 + $0x9c] sm:$0xff]
        %v468 = vld [vmem:[#allocation5 + $0xa4] sm:$0xf]
        %v469 = vld [vmem:[#allocation5 + $0xa8] sm:$0xff]
        %v470 = vld [vmem:[#allocation5 + $0xb0] sm:$0xf]
        %v471 = vld [vmem:[#allocation5 + $0xb4] sm:$0xff]
        %v472 = vld [vmem:[#allocation5 + $0xbc] sm:$0xf]
        %v475 = vunpack.c.l.b16 %v439
        %v476 = vunpack.c.l.b16 %v440
        %v477 = vpack.c.b16 %v476, %v475
        %v511 = vunpack.c.l.b16 %v441
        %v512 = vunpack.c.h.b16 %v441
        %v513 = vunpack.c.l.b16 %v442
        %v514 = vunpack.c.l.b16 %v443
        %v515 = vunpack.c.h.b16 %v443
        %v516 = vunpack.c.l.b16 %v444
        %v517 = vunpack.c.l.b16 %v445
        %v518 = vunpack.c.h.b16 %v445
        %v519 = vunpack.c.l.b16 %v446
        %v520 = vunpack.c.l.b16 %v447
        %v521 = vunpack.c.h.b16 %v447
        %v522 = vunpack.c.l.b16 %v448
        %v523 = vunpack.c.l.b16 %v449
        %v524 = vunpack.c.h.b16 %v449
        %v525 = vunpack.c.l.b16 %v450
        %v526 = vunpack.c.l.b16 %v451
        %v527 = vunpack.c.h.b16 %v451
        %v528 = vunpack.c.l.b16 %v452
        %v529 = vunpack.c.l.b16 %v453
        %v530 = vunpack.c.h.b16 %v453
        %v531 = vunpack.c.l.b16 %v454
        %v532 = vunpack.c.l.b16 %v455
        %v533 = vunpack.c.h.b16 %v455
        %v534 = vunpack.c.l.b16 %v456
        %v535 = vunpack.c.l.b16 %v457
        %v536 = vunpack.c.h.b16 %v457
        %v537 = vunpack.c.l.b16 %v458
        %v538 = vunpack.c.l.b16 %v459
        %v539 = vunpack.c.h.b16 %v459
        %v540 = vunpack.c.l.b16 %v460
        %v541 = vunpack.c.l.b16 %v461
        %v542 = vunpack.c.h.b16 %v461
        %v543 = vunpack.c.l.b16 %v462
        %v544 = vunpack.c.l.b16 %v463
        %v545 = vunpack.c.h.b16 %v463
        %v546 = vunpack.c.l.b16 %v464
        %v547 = vunpack.c.l.b16 %v465
        %v548 = vunpack.c.h.b16 %v465
        %v549 = vunpack.c.l.b16 %v466
        %v550 = vunpack.c.l.b16 %v467
        %v551 = vunpack.c.h.b16 %v467
        %v552 = vunpack.c.l.b16 %v468
        %v553 = vunpack.c.l.b16 %v469
        %v554 = vunpack.c.h.b16 %v469
        %v555 = vunpack.c.l.b16 %v470
        %v556 = vunpack.c.l.b16 %v471
        %v557 = vunpack.c.h.b16 %v471
        %v558 = vunpack.c.l.b16 %v472
        %v559 = vpack.c.b16 %v514, %v511
        %v560 = vpack.c.b16 %v515, %v512
        %v561 = vpack.c.b16 %v516, %v513
        %v562 = vpack.c.b16 %v520, %v517
        %v563 = vpack.c.b16 %v521, %v518
        %v564 = vpack.c.b16 %v522, %v519
        %v565 = vpack.c.b16 %v526, %v523
        %v566 = vpack.c.b16 %v527, %v524
        %v567 = vpack.c.b16 %v528, %v525
        %v568 = vpack.c.b16 %v532, %v529
        %v569 = vpack.c.b16 %v533, %v530
        %v570 = vpack.c.b16 %v534, %v531
        %v571 = vpack.c.b16 %v538, %v535
        %v572 = vpack.c.b16 %v539, %v536
        %v573 = vpack.c.b16 %v540, %v537
        %v574 = vpack.c.b16 %v544, %v541
        %v575 = vpack.c.b16 %v545, %v542
        %v576 = vpack.c.b16 %v546, %v543
        %v577 = vpack.c.b16 %v550, %v547
        %v578 = vpack.c.b16 %v551, %v548
        %v579 = vpack.c.b16 %v552, %v549
        %v580 = vpack.c.b16 %v556, %v553
        %v581 = vpack.c.b16 %v557, %v554
        %v582 = vpack.c.b16 %v558, %v555
        %607 = vmatpush.bf16.msra.mxu0 %v580
        %608 = vmatpush.bf16.msra.mxu0 %v577
        %609 = vmatpush.bf16.msra.mxu0 %v574
        %610 = vmatpush.bf16.msra.mxu0 %v571
        %611 = vmatpush.bf16.msra.mxu0 %v568
        %612 = vmatpush.bf16.msra.mxu0 %v565
        %613 = vmatpush.bf16.msra.mxu0 %v562
        %614 = vmatpush.bf16.msra.mxu0 %v559
        %615 = vmatmul.bf16.gmra.mxu0 %v477
        %v616 = vpop.f32.mrf.mxu0
        %v617 = vadd.f32 0.0, %v616
        %v618 = vpop.f32.mrf.mxu0
        %v619 = vadd.f32 0.0, %v618
        %620 = vdwg.mxu0
        %621 = vmatpush.bf16.msra.mxu0 %v581
        %622 = vmatpush.bf16.msra.mxu0 %v578
        %623 = vmatpush.bf16.msra.mxu0 %v575
        %624 = vmatpush.bf16.msra.mxu0 %v572
        %625 = vmatpush.bf16.msra.mxu0 %v569
        %626 = vmatpush.bf16.msra.mxu0 %v566
        %627 = vmatpush.bf16.msra.mxu0 %v563
        %628 = vmatpush.bf16.msra.mxu0 %v560
        %629 = vmatmul.bf16.gmra.mxu0 %v477
        %v630 = vpop.f32.mrf.mxu0
        %v631 = vadd.f32 0.0, %v630
        %v632 = vpop.f32.mrf.mxu0
        %v633 = vadd.f32 0.0, %v632
        %634 = vdwg.mxu0
        %635 = vmatpush.bf16.msra.mxu0 %v582
        %636 = vmatpush.bf16.msra.mxu0 %v579
        %637 = vmatpush.bf16.msra.mxu0 %v576
        %638 = vmatpush.bf16.msra.mxu0 %v573
        %639 = vmatpush.bf16.msra.mxu0 %v570
        %640 = vmatpush.bf16.msra.mxu0 %v567
        %641 = vmatpush.bf16.msra.mxu0 %v564
        %642 = vmatpush.bf16.msra.mxu0 %v561
        %643 = vmatmul.bf16.gmra.mxu0 %v477
        %v644 = vpop.f32.mrf.mxu0
        %v645 = vadd.f32 0.0, %v644
        %v646 = vpop.f32.mrf.mxu0
        %v647 = vadd.f32 0.0, %v646
        %648 = vdwg.mxu0
        %649 = vrot.lane.b32.xlu0 %v617, 112
        %v650 = vpop.permute.xlu0 %649
        %651 = vrot.lane.b32.xlu0 %v619, 112
        %v652 = vpop.permute.xlu0 %651
        %653 = vrot.lane.b32.xlu0 %v631, 112
        %v654 = vpop.permute.xlu0 %653
        %655 = vrot.lane.b32.xlu0 %v633, 112
        %v656 = vpop.permute.xlu0 %655
        %v657 = vlaneseq
        %v658 = vand.u32 %v657, 127
        %vm659 = vcmp.lt.s32.totalorder %v658, 112
        %v660 = vsel %vm659, %v650, %v654
        %v661 = vsel %vm659, %v652, %v656
        %v662 = vsel %vm659, %v654, %v650
        %v663 = vsel %vm659, %v656, %v652
        %664 = vrot.lane.b32.xlu0 %v617, 16
        %v665 = vpop.permute.xlu0 %664
        %666 = vrot.lane.b32.xlu0 %v619, 16
        %v667 = vpop.permute.xlu0 %666
        %668 = vrot.lane.b32.xlu0 %v631, 16
        %v669 = vpop.permute.xlu0 %668
        %670 = vrot.lane.b32.xlu0 %v633, 16
        %v671 = vpop.permute.xlu0 %670
        %vm672 = vcmp.lt.s32.totalorder %v658, 16
        %v673 = vsel %vm672, %v665, %v669
        %v674 = vsel %vm672, %v667, %v671
        %v675 = vsel %vm672, %v669, %v665
        %v676 = vsel %vm672, %v671, %v667
        %v677 = vld [vmem:[#allocation7] sm:$0xff]
        %v678 = vld [vmem:[#allocation7 + $0x8] sm:$0xff]
        %v679 = vld [vmem:[#allocation7 + $0x10] sm:$0xff]
        %v680 = vld [vmem:[#allocation7 + $0x18] sm:$0xff]
        %v681 = vmul.f32 %v617, %v677
        %v682 = vmul.f32 %v631, %v678
        %v683 = vmul.f32 %v619, %v679
        %v684 = vmul.f32 %v633, %v680
        %v685 = vld [vmem:[#allocation8] sm:$0xff]
        %v686 = vld [vmem:[#allocation8 + $0x8] sm:$0xff]
        %v687 = vld [vmem:[#allocation8 + $0x10] sm:$0xff]
        %v688 = vld [vmem:[#allocation8 + $0x18] sm:$0xff]
        %v689 = vmul.f32 %v660, %v685
        %v690 = vmul.f32 %v662, %v686
        %v691 = vmul.f32 %v661, %v687
        %v692 = vmul.f32 %v663, %v688
        %v693 = vadd.f32 %v681, %v689
        %v694 = vadd.f32 %v682, %v690
        %v695 = vadd.f32 %v683, %v691
        %v696 = vadd.f32 %v684, %v692
        %v697 = vld [vmem:[#allocation10] sm:$0xff]
        %v698 = vld [vmem:[#allocation10 + $0x8] sm:$0xff]
        %v699 = vld [vmem:[#allocation10 + $0x10] sm:$0xff]
        %v700 = vld [vmem:[#allocation10 + $0x18] sm:$0xff]
        %v701 = vmul.f32 %v675, %v697
        %v702 = vmul.f32 %v673, %v698
        %v703 = vmul.f32 %v676, %v699
        %v704 = vmul.f32 %v674, %v700
        %v705 = vadd.f32 %v693, %v701
        %v706 = vadd.f32 %v694, %v702
        %v707 = vadd.f32 %v695, %v703
        %v708 = vadd.f32 %v696, %v704
        %v709 = vpack.c.bf16 %v705, %v705
        %v710 = vpack.c.bf16 %v707, %v707
        %711 = vst [vmem:[%s417] sm:$0xf] %v709
        %712 = vst [vmem:[%s417 + $0x4] sm:$0xf] %v710
        %v713 = vpack.c.bf16 %v706, %v706
        %v714 = vpack.c.bf16 %v708, %v708
        %715 = vst [vmem:[%s424] sm:$0xf] %v713
        %716 = vst [vmem:[%s424 + $0x4] sm:$0xf] %v714
        %v717 = vpack.c.bf16 %v645, %v645
        %v718 = vpack.c.bf16 %v647, %v647
        %719 = vst [vmem:[%s431] sm:$0xf] %v717
        %720 = vst [vmem:[%s431 + $0x4] sm:$0xf] %v718
        %s721 = sand.u32 %s179, 1
        %s722 = scalar_lea.sflag [#allocation4], %s721
        %s723 = sand.u32 %s179, 1
        %s724 = smul.addr %s723, 8
        %s725 = scalar_lea.vmem [#allocation11], %s724
        %s726 = sand.u32 %s30, 1
        %s727 = scalar_lea.sflag [#allocation13], %s726
        %s728 = sand.u32 %s207, 1
        %s729 = smul.addr %s728, 8
        %s730 = scalar_lea.vmem [#allocation12], %s729
        %s731 = sand.u32 %s30, 1
        %s732 = scalar_lea.sflag [#allocation13], %s731
        %s733 = sand.u32 %s235, 1
        %s734 = smul.addr %s733, 8
        %s735 = scalar_lea.vmem [#allocation14], %s734
        // Predicated region
        $region61: #{tpu_custom_call.1} parent=39 // pred_check
          %p736 = pneg %p189
        $region62: #{tpu_custom_call.1} parent=39 // pred_check_branch
          %738 = sbr.rel (%p736) target = $region64
        $region63: #{tpu_custom_call.1} parent=39 // pred_region
          %s739 = smul.u32 2, %s35
          %741 = vsyncadd %s722, 0
          %s742 = smul.addr %s34, 2
          %s743 = sadd.s32 %s739, %s742
          %s744 = smul.addr %s743, 4
          %s745 = scalar_lea.hbm %s5, %s744
          %s746 = sshll.u32 %s725, 4
          %s747 = int_to_ptr.vmem [resolvable:$true] %s746
          %s748 = sshll.u32 %s745, 4
          %s749 = int_to_ptr.hbm [resolvable:$true] %s748
          %754 = dma.vmem_to_hbm [thread:$0]  %s747, 128, %s749, %s722, 64, 64, 4
        $region64: #{tpu_custom_call.1} parent=39 // pred_fallthru
          _
        // Predicated region
        $region65: #{tpu_custom_call.1} parent=39 // pred_check
          %p755 = pneg %p217
        $region66: #{tpu_custom_call.1} parent=39 // pred_check_branch
          %757 = sbr.rel (%p755) target = $region68
        $region67: #{tpu_custom_call.1} parent=39 // pred_region
          %s758 = smul.u32 2, %s35
          %760 = vsyncadd %s727, 0
          %s761 = smul.addr %s34, 2
          %s762 = sadd.s32 %s758, %s761
          %s763 = smul.addr %s762, 4
          %s764 = scalar_lea.hbm %s6, %s763
          %s765 = sshll.u32 %s730, 4
          %s766 = int_to_ptr.vmem [resolvable:$true] %s765
          %s767 = sshll.u32 %s764, 4
          %s768 = int_to_ptr.hbm [resolvable:$true] %s767
          %773 = dma.vmem_to_hbm [thread:$0]  %s766, 128, %s768, %s727, 64, 64, 4
        $region68: #{tpu_custom_call.1} parent=39 // pred_fallthru
          _
        // Predicated region
        $region69: #{tpu_custom_call.1} parent=39 // pred_check
          %p774 = pneg %p245
        $region70: #{tpu_custom_call.1} parent=39 // pred_check_branch
          %776 = sbr.rel (%p774) target = $region72
        $region71: #{tpu_custom_call.1} parent=39 // pred_region
          %s777 = smul.u32 2, %s35
          %779 = vsyncadd %s732, 0
          %s780 = smul.addr %s34, 2
          %s781 = sadd.s32 %s777, %s780
          %s782 = smul.addr %s781, 4
          %s783 = scalar_lea.hbm %s7, %s782
          %s784 = sshll.u32 %s735, 4
          %s785 = int_to_ptr.vmem [resolvable:$true] %s784
          %s786 = sshll.u32 %s783, 4
          %s787 = int_to_ptr.hbm [resolvable:$true] %s786
          %792 = dma.vmem_to_hbm [thread:$0]  %s785, 128, %s787, %s732, 64, 64, 4
        $region72: #{tpu_custom_call.1} parent=39 // pred_fallthru
          _
      $region40: #{tpu_custom_call.1} parent=5 // pred_fallthru
        _
      %p793 = scmp.le.s32.totalorder 2, %s25
      // Predicated region
      $region73: #{tpu_custom_call.1} parent=5 // pred_check
        %p794 = pneg %p793
      $region74: #{tpu_custom_call.1} parent=5 // pred_check_branch
        %796 = sbr.rel (%p794) target = $region76
      $region75: #{tpu_custom_call.1} parent=5 // pred_region
        %s797 = ssub.s32 %s25, 2
        // Predicated region
        $region77: #{tpu_custom_call.1} parent=75 // pred_check
          %p798 = pneg %p195
        $region78: #{tpu_custom_call.1} parent=75 // pred_check_branch
          %800 = sbr.rel (%p798) target = $region80
        $region79: #{tpu_custom_call.1} parent=75 // pred_region
          %s801 = sand.u32 %s180, 1
          %s802 = scalar_lea.sflag [#allocation4], %s801
          %s803 = sand.u32 %s180, 1
          %s804 = smul.addr %s803, 8
          %s805 = scalar_lea.vmem [#allocation11], %s804
          %807 = dma.done %s802, 128
        $region80: #{tpu_custom_call.1} parent=75 // pred_fallthru
          _
        // Predicated region
        $region81: #{tpu_custom_call.1} parent=75 // pred_check
          %p808 = pneg %p223
        $region82: #{tpu_custom_call.1} parent=75 // pred_check_branch
          %810 = sbr.rel (%p808) target = $region84
        $region83: #{tpu_custom_call.1} parent=75 // pred_region
          %s811 = sand.u32 %s31, 1
          %s812 = scalar_lea.sflag [#allocation13], %s811
          %s813 = sand.u32 %s208, 1
          %s814 = smul.addr %s813, 8
          %s815 = scalar_lea.vmem [#allocation12], %s814
          %817 = dma.done %s812, 128
        $region84: #{tpu_custom_call.1} parent=75 // pred_fallthru
          _
        // Predicated region
        $region85: #{tpu_custom_call.1} parent=75 // pred_check
          %p818 = pneg %p251
        $region86: #{tpu_custom_call.1} parent=75 // pred_check_branch
          %820 = sbr.rel (%p818) target = $region88
        $region87: #{tpu_custom_call.1} parent=75 // pred_region
          %s821 = sand.u32 %s31, 1
          %s822 = scalar_lea.sflag [#allocation13], %s821
          %s823 = sand.u32 %s236, 1
          %s824 = smul.addr %s823, 8
          %s825 = scalar_lea.vmem [#allocation14], %s824
          %827 = dma.done %s822, 128
        $region88: #{tpu_custom_call.1} parent=75 // pred_fallthru
          _
      $region76: #{tpu_custom_call.1} parent=5 // pred_fallthru
        _
    $region6: #{tpu_custom_call.1} parent=1 // loop_footer
      %s29 = sadd.s32 1, %s25
    $region7: #{tpu_custom_call.1} parent=1 // loop_footer_branch
      %24 = sbr.rel target = $region3
    $region8: #{tpu_custom_call.1} parent=1 // loop_exit
      _
    %828 = vsyncpa [#allocation3], 1
    %s829 = scalar_lea.sflag [#allocation3], 1
    %830 = vsyncpa %s829, 1
    %831 = vsyncpa [#allocation6], 1
    %832 = vsyncpa [#allocation9], 1
    %833 = vsyncpa [#allocation4], 1
    %s834 = scalar_lea.sflag [#allocation4], 1
    %835 = vsyncpa %s834, 1
    %836 = vsyncpa [#allocation13], 1
    %s837 = scalar_lea.sflag [#allocation13], 1
    %838 = vsyncpa %s837, 1

</llo_original>
